<compile_context>
chip_gen: v5e
topology: v5e:2x2
jax: 0.10.0
libtpu: 0.0.40
codegen_flags: <defaults>
</compile_context>

<pallas_src>
import functools

import jax
import jax.numpy as jnp
from jax.experimental import pallas as pl
from jax.experimental.pallas import tpu as pltpu


def _rnn_kernel(x_ref, h0_ref,
                wih0_ref, whh0_ref, b0_ref,
                wih1_ref, whh1_ref, b1_ref,
                wfc_ref, bfc_ref,
                out_ref, hn_ref,
                xproj_sc, h2seq_sc,
                *, T, B):
    # (1) Hoisted, batched input projection for ALL timesteps at once:
    #     (T*B, I) @ (I, H) + (b_ih0 + b_hh0)  -- off the serial critical path.
    xproj_sc[...] = (
        jnp.dot(x_ref[...], wih0_ref[...], preferred_element_type=jnp.float32)
        + b0_ref[...])

    # Weights / bias loaded once, reused across the unrolled recurrence.
    whh0 = whh0_ref[...]
    wih1 = wih1_ref[...]
    whh1 = whh1_ref[...]
    b1 = b1_ref[...]

    h1 = h0_ref[0]          # (B, H) layer-0 hidden carry (as a value)
    h2 = h0_ref[1]          # (B, H) layer-1 hidden carry (as a value)

    # (2) Fully-unrolled serial recurrence (T is small and static).  Only the
    #     recurrent matmuls + tanh remain per step.
    for t in range(T):
        xp_t = xproj_sc[t * B:(t + 1) * B, :]                       # (B, H)
        h1 = jnp.tanh(
            xp_t + jnp.dot(h1, whh0, preferred_element_type=jnp.float32))
        h2 = jnp.tanh(
            jnp.dot(h1, wih1, preferred_element_type=jnp.float32)
            + jnp.dot(h2, whh1, preferred_element_type=jnp.float32)
            + b1)
        h2seq_sc[t * B:(t + 1) * B, :] = h2                          # collect top-layer outputs

    # (3) Hoisted FC head over all timesteps: one (T*B, H)@(H, O) matmul and a
    #     single lane-dense slab store.
    out_ref[...] = (
        jnp.dot(h2seq_sc[...], wfc_ref[...], preferred_element_type=jnp.float32)
        + bfc_ref[...]).astype(out_ref.dtype)

    # (4) Final hidden state of both layers, written once.
    hn_ref[0] = h1.astype(hn_ref.dtype)
    hn_ref[1] = h2.astype(hn_ref.dtype)


@jax.jit
def rnn_forward(x, h0, params):
    """x: (T, B, I) f32;  h0: (2, B, H) f32;  returns (out (T,B,O), hn (2,B,H))."""
    T, B, I = x.shape
    _, _, H = h0.shape
    O = params["w_fc"].shape[0]

    # Flatten time*batch so the hoisted matmuls see T*B rows (better MXU row
    # occupancy than per-step (B, K) matmuls).  Row-major => free reshape.
    x2d = x.reshape(T * B, I)

    # Pre-transpose weights so the kernel does plain (M,K)@(K,N) matmuls, and
    # pre-sum the per-layer biases (b_ih + b_hh).
    wih0_t = params["w_ih0"].T                                   # (I, H)
    whh0_t = params["w_hh0"].T                                   # (H, H)
    wih1_t = params["w_ih1"].T                                   # (H, H)
    whh1_t = params["w_hh1"].T                                   # (H, H)
    wfc_t = params["w_fc"].T                                     # (H, O)
    b0 = (params["b_ih0"] + params["b_hh0"]).reshape(1, H)
    b1 = (params["b_ih1"] + params["b_hh1"]).reshape(1, H)
    bfc = params["b_fc"].reshape(1, O)

    kernel = functools.partial(_rnn_kernel, T=T, B=B)

    out2d, hn = pl.pallas_call(
        kernel,
        out_shape=(
            jax.ShapeDtypeStruct((T * B, O), jnp.float32),       # output slab
            jax.ShapeDtypeStruct((2, B, H), jnp.float32),        # final hidden
        ),
        scratch_shapes=[
            pltpu.VMEM((T * B, H), jnp.float32),                 # hoisted input projections
            pltpu.VMEM((T * B, H), jnp.float32),                 # top-layer outputs for all t
        ],
    )(x2d, h0, wih0_t, whh0_t, b0, wih1_t, whh1_t, b1, wfc_t, bfc)

    return out2d.reshape(T, B, O), hn


def rnn_forward_ref(x, h0, params):
    """Pure-JAX reference matching torch.nn.RNN(num_layers=2, tanh) + Linear (eval)."""
    def step(carry, x_t):
        h1, h2 = carry
        h1 = jnp.tanh(x_t @ params["w_ih0"].T + params["b_ih0"]
                      + h1 @ params["w_hh0"].T + params["b_hh0"])
        h2 = jnp.tanh(h1 @ params["w_ih1"].T + params["b_ih1"]
                      + h2 @ params["w_hh1"].T + params["b_hh1"])
        y = h2 @ params["w_fc"].T + params["b_fc"]
        return (h1, h2), y
    (h1, h2), ys = jax.lax.scan(step, (h0[0], h0[1]), x)
    return ys, jnp.stack([h1, h2])


def init_params(key, input_size, hidden_size, output_size):
    ks = jax.random.split(key, 10)
    s = 1.0 / jnp.sqrt(hidden_size)
    u = lambda k, shape: jax.random.uniform(k, shape, jnp.float32, -s, s)
    return {
        "w_ih0": u(ks[0], (hidden_size, input_size)),
        "w_hh0": u(ks[1], (hidden_size, hidden_size)),
        "b_ih0": u(ks[2], (hidden_size,)),
        "b_hh0": u(ks[3], (hidden_size,)),
        "w_ih1": u(ks[4], (hidden_size, hidden_size)),
        "w_hh1": u(ks[5], (hidden_size, hidden_size)),
        "b_ih1": u(ks[6], (hidden_size,)),
        "b_hh1": u(ks[7], (hidden_size,)),
        "w_fc": u(ks[8], (output_size, hidden_size)),
        "b_fc": u(ks[9], (output_size,)),
    }


if __name__ == "__main__":
    seq_len, batch, input_size, hidden_size, output_size = 8, 2, 32, 32, 32

    key = jax.random.PRNGKey(0)
    k_x, k_p = jax.random.split(key)
    x = jax.random.normal(k_x, (seq_len, batch, input_size), dtype=jnp.float32)
    h0 = jnp.zeros((2, batch, hidden_size), dtype=jnp.float32)  # hidden=None
    params = init_params(k_p, input_size, hidden_size, output_size)

    out, hn = rnn_forward(x, h0, params)
    out = jax.block_until_ready(out)
    hn = jax.block_until_ready(hn)

    out_expect, hn_expect = rnn_forward_ref(x, h0, params)
    assert out.shape == (seq_len, batch, output_size)
    assert hn.shape == (2, batch, hidden_size)
    assert jnp.allclose(out, out_expect, atol=1e-5), "output mismatch"
    assert jnp.allclose(hn, hn_expect, atol=1e-5), "hidden mismatch"

    print("KERNEL_OK")
</pallas_src>

<mosaic_0001>
module attributes {stable_mosaic.version = 11 : i64} {
  func.func @_rnn_kernel(%arg0: memref<16x32xf32, #tpu.memory_space<vmem>>, %arg1: memref<2x2x32xf32, #tpu.memory_space<vmem>>, %arg2: memref<32x32xf32, #tpu.memory_space<vmem>>, %arg3: memref<32x32xf32, #tpu.memory_space<vmem>>, %arg4: memref<1x32xf32, #tpu.memory_space<vmem>>, %arg5: memref<32x32xf32, #tpu.memory_space<vmem>>, %arg6: memref<32x32xf32, #tpu.memory_space<vmem>>, %arg7: memref<1x32xf32, #tpu.memory_space<vmem>>, %arg8: memref<32x32xf32, #tpu.memory_space<vmem>>, %arg9: memref<1x32xf32, #tpu.memory_space<vmem>>, %arg10: memref<16x32xf32, #tpu.memory_space<vmem>>, %arg11: memref<2x2x32xf32, #tpu.memory_space<vmem>>, %arg12: memref<16x32xf32, #tpu.memory_space<vmem>>, %arg13: memref<16x32xf32, #tpu.memory_space<vmem>>) attributes {dimension_semantics = [], scalar_prefetch = 0 : i64, scratch_operands = 2 : i64, tpu.core_type = #tpu.core_type<tc>} {
    %c0 = arith.constant 0 : index
    %c0_0 = arith.constant 0 : index
    %0 = vector.load %arg0[%c0, %c0_0] : memref<16x32xf32, #tpu.memory_space<vmem>>, vector<16x32xf32>
    %c0_1 = arith.constant 0 : index
    %c0_2 = arith.constant 0 : index
    %1 = vector.load %arg2[%c0_1, %c0_2] : memref<32x32xf32, #tpu.memory_space<vmem>>, vector<32x32xf32>
    %cst = arith.constant dense<0.000000e+00> : vector<16x32xf32>
    %2 = tpu.matmul %0, %1, %cst {dimension_numbers = #tpu.dot_dimension_numbers<[1], [0], [0], [1], [0, 0, 1, 1], [], []>} : vector<16x32xf32>, vector<32x32xf32>, vector<16x32xf32> -> vector<16x32xf32>
    %c0_3 = arith.constant 0 : index
    %c0_4 = arith.constant 0 : index
    %3 = vector.load %arg4[%c0_3, %c0_4] : memref<1x32xf32, #tpu.memory_space<vmem>>, vector<1x32xf32>
    %4 = vector.broadcast %3 : vector<1x32xf32> to vector<16x32xf32>
    %5 = arith.addf %2, %4 : vector<16x32xf32>
    %c0_5 = arith.constant 0 : index
    %c0_6 = arith.constant 0 : index
    %6 = vector.load %arg12[%c0_5, %c0_6] : memref<16x32xf32, #tpu.memory_space<vmem>>, vector<16x32xf32>
    tpu.vector_store %arg12[%c0_5, %c0_6], %5 {strides = array<i32>} : memref<16x32xf32, #tpu.memory_space<vmem>>, vector<16x32xf32>,
    %c0_7 = arith.constant 0 : index
    %c0_8 = arith.constant 0 : index
    %7 = vector.load %arg3[%c0_7, %c0_8] : memref<32x32xf32, #tpu.memory_space<vmem>>, vector<32x32xf32>
    %c0_9 = arith.constant 0 : index
    %c0_10 = arith.constant 0 : index
    %8 = vector.load %arg5[%c0_9, %c0_10] : memref<32x32xf32, #tpu.memory_space<vmem>>, vector<32x32xf32>
    %c0_11 = arith.constant 0 : index
    %c0_12 = arith.constant 0 : index
    %9 = vector.load %arg6[%c0_11, %c0_12] : memref<32x32xf32, #tpu.memory_space<vmem>>, vector<32x32xf32>
    %c0_13 = arith.constant 0 : index
    %c0_14 = arith.constant 0 : index
    %10 = vector.load %arg7[%c0_13, %c0_14] : memref<1x32xf32, #tpu.memory_space<vmem>>, vector<1x32xf32>
    %c0_15 = arith.constant 0 : index
    %c0_16 = arith.constant 0 : index
    %c0_17 = arith.constant 0 : index
    %11 = vector.load %arg1[%c0_15, %c0_16, %c0_17] : memref<2x2x32xf32, #tpu.memory_space<vmem>>, vector<1x2x32xf32>
    %12 = vector.shape_cast %11 : vector<1x2x32xf32> to vector<2x32xf32>
    %c1 = arith.constant 1 : index
    %c0_18 = arith.constant 0 : index
    %c0_19 = arith.constant 0 : index
    %13 = vector.load %arg1[%c1, %c0_18, %c0_19] : memref<2x2x32xf32, #tpu.memory_space<vmem>>, vector<1x2x32xf32>
    %14 = vector.shape_cast %13 : vector<1x2x32xf32> to vector<2x32xf32>
    %c0_20 = arith.constant 0 : index
    %c0_21 = arith.constant 0 : index
    %15 = vector.load %arg12[%c0_20, %c0_21] : memref<16x32xf32, #tpu.memory_space<vmem>>, vector<2x32xf32>
    %cst_22 = arith.constant dense<0.000000e+00> : vector<2x32xf32>
    %16 = tpu.matmul %12, %7, %cst_22 {dimension_numbers = #tpu.dot_dimension_numbers<[1], [0], [0], [1], [0, 0, 1, 1], [], []>} : vector<2x32xf32>, vector<32x32xf32>, vector<2x32xf32> -> vector<2x32xf32>
    %17 = arith.addf %15, %16 : vector<2x32xf32>
    %18 = math.tanh %17 : vector<2x32xf32>
    %cst_23 = arith.constant dense<0.000000e+00> : vector<2x32xf32>
    %19 = tpu.matmul %18, %8, %cst_23 {dimension_numbers = #tpu.dot_dimension_numbers<[1], [0], [0], [1], [0, 0, 1, 1], [], []>} : vector<2x32xf32>, vector<32x32xf32>, vector<2x32xf32> -> vector<2x32xf32>
    %cst_24 = arith.constant dense<0.000000e+00> : vector<2x32xf32>
    %20 = tpu.matmul %14, %9, %cst_24 {dimension_numbers = #tpu.dot_dimension_numbers<[1], [0], [0], [1], [0, 0, 1, 1], [], []>} : vector<2x32xf32>, vector<32x32xf32>, vector<2x32xf32> -> vector<2x32xf32>
    %21 = arith.addf %19, %20 : vector<2x32xf32>
    %22 = vector.broadcast %10 : vector<1x32xf32> to vector<2x32xf32>
    %23 = arith.addf %21, %22 : vector<2x32xf32>
    %24 = math.tanh %23 : vector<2x32xf32>
    %c0_25 = arith.constant 0 : index
    %c0_26 = arith.constant 0 : index
    %25 = vector.load %arg13[%c0_25, %c0_26] : memref<16x32xf32, #tpu.memory_space<vmem>>, vector<2x32xf32>
    tpu.vector_store %arg13[%c0_25, %c0_26], %24 {strides = array<i32>} : memref<16x32xf32, #tpu.memory_space<vmem>>, vector<2x32xf32>,
    %c2 = arith.constant 2 : index
    %c0_27 = arith.constant 0 : index
    %26 = vector.load %arg12[%c2, %c0_27] : memref<16x32xf32, #tpu.memory_space<vmem>>, vector<2x32xf32>
    %cst_28 = arith.constant dense<0.000000e+00> : vector<2x32xf32>
    %27 = tpu.matmul %18, %7, %cst_28 {dimension_numbers = #tpu.dot_dimension_numbers<[1], [0], [0], [1], [0, 0, 1, 1], [], []>} : vector<2x32xf32>, vector<32x32xf32>, vector<2x32xf32> -> vector<2x32xf32>
    %28 = arith.addf %26, %27 : vector<2x32xf32>
    %29 = math.tanh %28 : vector<2x32xf32>
    %cst_29 = arith.constant dense<0.000000e+00> : vector<2x32xf32>
    %30 = tpu.matmul %29, %8, %cst_29 {dimension_numbers = #tpu.dot_dimension_numbers<[1], [0], [0], [1], [0, 0, 1, 1], [], []>} : vector<2x32xf32>, vector<32x32xf32>, vector<2x32xf32> -> vector<2x32xf32>
    %cst_30 = arith.constant dense<0.000000e+00> : vector<2x32xf32>
    %31 = tpu.matmul %24, %9, %cst_30 {dimension_numbers = #tpu.dot_dimension_numbers<[1], [0], [0], [1], [0, 0, 1, 1], [], []>} : vector<2x32xf32>, vector<32x32xf32>, vector<2x32xf32> -> vector<2x32xf32>
    %32 = arith.addf %30, %31 : vector<2x32xf32>
    %33 = vector.broadcast %10 : vector<1x32xf32> to vector<2x32xf32>
    %34 = arith.addf %32, %33 : vector<2x32xf32>
    %35 = math.tanh %34 : vector<2x32xf32>
    %c2_31 = arith.constant 2 : index
    %c0_32 = arith.constant 0 : index
    %36 = vector.load %arg13[%c2_31, %c0_32] : memref<16x32xf32, #tpu.memory_space<vmem>>, vector<2x32xf32>
    tpu.vector_store %arg13[%c2_31, %c0_32], %35 {strides = array<i32>} : memref<16x32xf32, #tpu.memory_space<vmem>>, vector<2x32xf32>,
    %c4 = arith.constant 4 : index
    %c0_33 = arith.constant 0 : index
    %37 = vector.load %arg12[%c4, %c0_33] : memref<16x32xf32, #tpu.memory_space<vmem>>, vector<2x32xf32>
    %cst_34 = arith.constant dense<0.000000e+00> : vector<2x32xf32>
    %38 = tpu.matmul %29, %7, %cst_34 {dimension_numbers = #tpu.dot_dimension_numbers<[1], [0], [0], [1], [0, 0, 1, 1], [], []>} : vector<2x32xf32>, vector<32x32xf32>, vector<2x32xf32> -> vector<2x32xf32>
    %39 = arith.addf %37, %38 : vector<2x32xf32>
    %40 = math.tanh %39 : vector<2x32xf32>
    %cst_35 = arith.constant dense<0.000000e+00> : vector<2x32xf32>
    %41 = tpu.matmul %40, %8, %cst_35 {dimension_numbers = #tpu.dot_dimension_numbers<[1], [0], [0], [1], [0, 0, 1, 1], [], []>} : vector<2x32xf32>, vector<32x32xf32>, vector<2x32xf32> -> vector<2x32xf32>
    %cst_36 = arith.constant dense<0.000000e+00> : vector<2x32xf32>
    %42 = tpu.matmul %35, %9, %cst_36 {dimension_numbers = #tpu.dot_dimension_numbers<[1], [0], [0], [1], [0, 0, 1, 1], [], []>} : vector<2x32xf32>, vector<32x32xf32>, vector<2x32xf32> -> vector<2x32xf32>
    %43 = arith.addf %41, %42 : vector<2x32xf32>
    %44 = vector.broadcast %10 : vector<1x32xf32> to vector<2x32xf32>
    %45 = arith.addf %43, %44 : vector<2x32xf32>
    %46 = math.tanh %45 : vector<2x32xf32>
    %c4_37 = arith.constant 4 : index
    %c0_38 = arith.constant 0 : index
    %47 = vector.load %arg13[%c4_37, %c0_38] : memref<16x32xf32, #tpu.memory_space<vmem>>, vector<2x32xf32>
    tpu.vector_store %arg13[%c4_37, %c0_38], %46 {strides = array<i32>} : memref<16x32xf32, #tpu.memory_space<vmem>>, vector<2x32xf32>,
    %c6 = arith.constant 6 : index
    %c0_39 = arith.constant 0 : index
    %48 = vector.load %arg12[%c6, %c0_39] : memref<16x32xf32, #tpu.memory_space<vmem>>, vector<2x32xf32>
    %cst_40 = arith.constant dense<0.000000e+00> : vector<2x32xf32>
    %49 = tpu.matmul %40, %7, %cst_40 {dimension_numbers = #tpu.dot_dimension_numbers<[1], [0], [0], [1], [0, 0, 1, 1], [], []>} : vector<2x32xf32>, vector<32x32xf32>, vector<2x32xf32> -> vector<2x32xf32>
    %50 = arith.addf %48, %49 : vector<2x32xf32>
    %51 = math.tanh %50 : vector<2x32xf32>
    %cst_41 = arith.constant dense<0.000000e+00> : vector<2x32xf32>
    %52 = tpu.matmul %51, %8, %cst_41 {dimension_numbers = #tpu.dot_dimension_numbers<[1], [0], [0], [1], [0, 0, 1, 1], [], []>} : vector<2x32xf32>, vector<32x32xf32>, vector<2x32xf32> -> vector<2x32xf32>
    %cst_42 = arith.constant dense<0.000000e+00> : vector<2x32xf32>
    %53 = tpu.matmul %46, %9, %cst_42 {dimension_numbers = #tpu.dot_dimension_numbers<[1], [0], [0], [1], [0, 0, 1, 1], [], []>} : vector<2x32xf32>, vector<32x32xf32>, vector<2x32xf32> -> vector<2x32xf32>
    %54 = arith.addf %52, %53 : vector<2x32xf32>
    %55 = vector.broadcast %10 : vector<1x32xf32> to vector<2x32xf32>
    %56 = arith.addf %54, %55 : vector<2x32xf32>
    %57 = math.tanh %56 : vector<2x32xf32>
    %c6_43 = arith.constant 6 : index
    %c0_44 = arith.constant 0 : index
    %58 = vector.load %arg13[%c6_43, %c0_44] : memref<16x32xf32, #tpu.memory_space<vmem>>, vector<2x32xf32>
    tpu.vector_store %arg13[%c6_43, %c0_44], %57 {strides = array<i32>} : memref<16x32xf32, #tpu.memory_space<vmem>>, vector<2x32xf32>,
    %c8 = arith.constant 8 : index
    %c0_45 = arith.constant 0 : index
    %59 = vector.load %arg12[%c8, %c0_45] : memref<16x32xf32, #tpu.memory_space<vmem>>, vector<2x32xf32>
    %cst_46 = arith.constant dense<0.000000e+00> : vector<2x32xf32>
    %60 = tpu.matmul %51, %7, %cst_46 {dimension_numbers = #tpu.dot_dimension_numbers<[1], [0], [0], [1], [0, 0, 1, 1], [], []>} : vector<2x32xf32>, vector<32x32xf32>, vector<2x32xf32> -> vector<2x32xf32>
    %61 = arith.addf %59, %60 : vector<2x32xf32>
    %62 = math.tanh %61 : vector<2x32xf32>
    %cst_47 = arith.constant dense<0.000000e+00> : vector<2x32xf32>
    %63 = tpu.matmul %62, %8, %cst_47 {dimension_numbers = #tpu.dot_dimension_numbers<[1], [0], [0], [1], [0, 0, 1, 1], [], []>} : vector<2x32xf32>, vector<32x32xf32>, vector<2x32xf32> -> vector<2x32xf32>
    %cst_48 = arith.constant dense<0.000000e+00> : vector<2x32xf32>
    %64 = tpu.matmul %57, %9, %cst_48 {dimension_numbers = #tpu.dot_dimension_numbers<[1], [0], [0], [1], [0, 0, 1, 1], [], []>} : vector<2x32xf32>, vector<32x32xf32>, vector<2x32xf32> -> vector<2x32xf32>
    %65 = arith.addf %63, %64 : vector<2x32xf32>
    %66 = vector.broadcast %10 : vector<1x32xf32> to vector<2x32xf32>
    %67 = arith.addf %65, %66 : vector<2x32xf32>
    %68 = math.tanh %67 : vector<2x32xf32>
    %c8_49 = arith.constant 8 : index
    %c0_50 = arith.constant 0 : index
    %69 = vector.load %arg13[%c8_49, %c0_50] : memref<16x32xf32, #tpu.memory_space<vmem>>, vector<2x32xf32>
    tpu.vector_store %arg13[%c8_49, %c0_50], %68 {strides = array<i32>} : memref<16x32xf32, #tpu.memory_space<vmem>>, vector<2x32xf32>,
    %c10 = arith.constant 10 : index
    %c0_51 = arith.constant 0 : index
    %70 = vector.load %arg12[%c10, %c0_51] : memref<16x32xf32, #tpu.memory_space<vmem>>, vector<2x32xf32>
    %cst_52 = arith.constant dense<0.000000e+00> : vector<2x32xf32>
    %71 = tpu.matmul %62, %7, %cst_52 {dimension_numbers = #tpu.dot_dimension_numbers<[1], [0], [0], [1], [0, 0, 1, 1], [], []>} : vector<2x32xf32>, vector<32x32xf32>, vector<2x32xf32> -> vector<2x32xf32>
    %72 = arith.addf %70, %71 : vector<2x32xf32>
    %73 = math.tanh %72 : vector<2x32xf32>
    %cst_53 = arith.constant dense<0.000000e+00> : vector<2x32xf32>
    %74 = tpu.matmul %73, %8, %cst_53 {dimension_numbers = #tpu.dot_dimension_numbers<[1], [0], [0], [1], [0, 0, 1, 1], [], []>} : vector<2x32xf32>, vector<32x32xf32>, vector<2x32xf32> -> vector<2x32xf32>
    %cst_54 = arith.constant dense<0.000000e+00> : vector<2x32xf32>
    %75 = tpu.matmul %68, %9, %cst_54 {dimension_numbers = #tpu.dot_dimension_numbers<[1], [0], [0], [1], [0, 0, 1, 1], [], []>} : vector<2x32xf32>, vector<32x32xf32>, vector<2x32xf32> -> vector<2x32xf32>
    %76 = arith.addf %74, %75 : vector<2x32xf32>
    %77 = vector.broadcast %10 : vector<1x32xf32> to vector<2x32xf32>
    %78 = arith.addf %76, %77 : vector<2x32xf32>
    %79 = math.tanh %78 : vector<2x32xf32>
    %c10_55 = arith.constant 10 : index
    %c0_56 = arith.constant 0 : index
    %80 = vector.load %arg13[%c10_55, %c0_56] : memref<16x32xf32, #tpu.memory_space<vmem>>, vector<2x32xf32>
    tpu.vector_store %arg13[%c10_55, %c0_56], %79 {strides = array<i32>} : memref<16x32xf32, #tpu.memory_space<vmem>>, vector<2x32xf32>,
    %c12 = arith.constant 12 : index
    %c0_57 = arith.constant 0 : index
    %81 = vector.load %arg12[%c12, %c0_57] : memref<16x32xf32, #tpu.memory_space<vmem>>, vector<2x32xf32>
    %cst_58 = arith.constant dense<0.000000e+00> : vector<2x32xf32>
    %82 = tpu.matmul %73, %7, %cst_58 {dimension_numbers = #tpu.dot_dimension_numbers<[1], [0], [0], [1], [0, 0, 1, 1], [], []>} : vector<2x32xf32>, vector<32x32xf32>, vector<2x32xf32> -> vector<2x32xf32>
    %83 = arith.addf %81, %82 : vector<2x32xf32>
    %84 = math.tanh %83 : vector<2x32xf32>
    %cst_59 = arith.constant dense<0.000000e+00> : vector<2x32xf32>
    %85 = tpu.matmul %84, %8, %cst_59 {dimension_numbers = #tpu.dot_dimension_numbers<[1], [0], [0], [1], [0, 0, 1, 1], [], []>} : vector<2x32xf32>, vector<32x32xf32>, vector<2x32xf32> -> vector<2x32xf32>
    %cst_60 = arith.constant dense<0.000000e+00> : vector<2x32xf32>
    %86 = tpu.matmul %79, %9, %cst_60 {dimension_numbers = #tpu.dot_dimension_numbers<[1], [0], [0], [1], [0, 0, 1, 1], [], []>} : vector<2x32xf32>, vector<32x32xf32>, vector<2x32xf32> -> vector<2x32xf32>
    %87 = arith.addf %85, %86 : vector<2x32xf32>
    %88 = vector.broadcast %10 : vector<1x32xf32> to vector<2x32xf32>
    %89 = arith.addf %87, %88 : vector<2x32xf32>
    %90 = math.tanh %89 : vector<2x32xf32>
    %c12_61 = arith.constant 12 : index
    %c0_62 = arith.constant 0 : index
    %91 = vector.load %arg13[%c12_61, %c0_62] : memref<16x32xf32, #tpu.memory_space<vmem>>, vector<2x32xf32>
    tpu.vector_store %arg13[%c12_61, %c0_62], %90 {strides = array<i32>} : memref<16x32xf32, #tpu.memory_space<vmem>>, vector<2x32xf32>,
    %c14 = arith.constant 14 : index
    %c0_63 = arith.constant 0 : index
    %92 = vector.load %arg12[%c14, %c0_63] : memref<16x32xf32, #tpu.memory_space<vmem>>, vector<2x32xf32>
    %cst_64 = arith.constant dense<0.000000e+00> : vector<2x32xf32>
    %93 = tpu.matmul %84, %7, %cst_64 {dimension_numbers = #tpu.dot_dimension_numbers<[1], [0], [0], [1], [0, 0, 1, 1], [], []>} : vector<2x32xf32>, vector<32x32xf32>, vector<2x32xf32> -> vector<2x32xf32>
    %94 = arith.addf %92, %93 : vector<2x32xf32>
    %95 = math.tanh %94 : vector<2x32xf32>
    %cst_65 = arith.constant dense<0.000000e+00> : vector<2x32xf32>
    %96 = tpu.matmul %95, %8, %cst_65 {dimension_numbers = #tpu.dot_dimension_numbers<[1], [0], [0], [1], [0, 0, 1, 1], [], []>} : vector<2x32xf32>, vector<32x32xf32>, vector<2x32xf32> -> vector<2x32xf32>
    %cst_66 = arith.constant dense<0.000000e+00> : vector<2x32xf32>
    %97 = tpu.matmul %90, %9, %cst_66 {dimension_numbers = #tpu.dot_dimension_numbers<[1], [0], [0], [1], [0, 0, 1, 1], [], []>} : vector<2x32xf32>, vector<32x32xf32>, vector<2x32xf32> -> vector<2x32xf32>
    %98 = arith.addf %96, %97 : vector<2x32xf32>
    %99 = vector.broadcast %10 : vector<1x32xf32> to vector<2x32xf32>
    %100 = arith.addf %98, %99 : vector<2x32xf32>
    %101 = math.tanh %100 : vector<2x32xf32>
    %c14_67 = arith.constant 14 : index
    %c0_68 = arith.constant 0 : index
    %102 = vector.load %arg13[%c14_67, %c0_68] : memref<16x32xf32, #tpu.memory_space<vmem>>, vector<2x32xf32>
    tpu.vector_store %arg13[%c14_67, %c0_68], %101 {strides = array<i32>} : memref<16x32xf32, #tpu.memory_space<vmem>>, vector<2x32xf32>,
    %c0_69 = arith.constant 0 : index
    %c0_70 = arith.constant 0 : index
    %103 = vector.load %arg13[%c0_69, %c0_70] : memref<16x32xf32, #tpu.memory_space<vmem>>, vector<16x32xf32>
    %c0_71 = arith.constant 0 : index
    %c0_72 = arith.constant 0 : index
    %104 = vector.load %arg8[%c0_71, %c0_72] : memref<32x32xf32, #tpu.memory_space<vmem>>, vector<32x32xf32>
    %cst_73 = arith.constant dense<0.000000e+00> : vector<16x32xf32>
    %105 = tpu.matmul %103, %104, %cst_73 {dimension_numbers = #tpu.dot_dimension_numbers<[1], [0], [0], [1], [0, 0, 1, 1], [], []>} : vector<16x32xf32>, vector<32x32xf32>, vector<16x32xf32> -> vector<16x32xf32>
    %c0_74 = arith.constant 0 : index
    %c0_75 = arith.constant 0 : index
    %106 = vector.load %arg9[%c0_74, %c0_75] : memref<1x32xf32, #tpu.memory_space<vmem>>, vector<1x32xf32>
    %107 = vector.broadcast %106 : vector<1x32xf32> to vector<16x32xf32>
    %108 = arith.addf %105, %107 : vector<16x32xf32>
    %c0_76 = arith.constant 0 : index
    %c0_77 = arith.constant 0 : index
    %109 = vector.load %arg10[%c0_76, %c0_77] : memref<16x32xf32, #tpu.memory_space<vmem>>, vector<16x32xf32>
    tpu.vector_store %arg10[%c0_76, %c0_77], %108 {strides = array<i32>} : memref<16x32xf32, #tpu.memory_space<vmem>>, vector<16x32xf32>,
    %c0_78 = arith.constant 0 : index
    %c0_79 = arith.constant 0 : index
    %c0_80 = arith.constant 0 : index
    %110 = vector.load %arg11[%c0_78, %c0_79, %c0_80] : memref<2x2x32xf32, #tpu.memory_space<vmem>>, vector<1x2x32xf32>
    %111 = vector.shape_cast %110 : vector<1x2x32xf32> to vector<2x32xf32>
    %112 = vector.shape_cast %95 : vector<2x32xf32> to vector<1x2x32xf32>
    tpu.vector_store %arg11[%c0_78, %c0_79, %c0_80], %112 {strides = array<i32>} : memref<2x2x32xf32, #tpu.memory_space<vmem>>, vector<1x2x32xf32>,
    %c1_81 = arith.constant 1 : index
    %c0_82 = arith.constant 0 : index
    %c0_83 = arith.constant 0 : index
    %113 = vector.load %arg11[%c1_81, %c0_82, %c0_83] : memref<2x2x32xf32, #tpu.memory_space<vmem>>, vector<1x2x32xf32>
    %114 = vector.shape_cast %113 : vector<1x2x32xf32> to vector<2x32xf32>
    %115 = vector.shape_cast %101 : vector<2x32xf32> to vector<1x2x32xf32>
    tpu.vector_store %arg11[%c1_81, %c0_82, %c0_83], %115 {strides = array<i32>} : memref<2x2x32xf32, #tpu.memory_space<vmem>>, vector<1x2x32xf32>,
    return
  }
}

</mosaic_0001>

<llo_original>
// kernel: rnn_forward.1
$region0: #{rnn_forward.1}
  #allocation0 [shape = 'u32[]', space=smem, size = 0x4, offset = 0x4, fixed_abs, tag = 'smem constant byte address 0x4 - core index']
  #allocation1 [shape = 'u32[72,128]{1,0:T(1,128)}', space=vmem, size = 0x9000, scoped, tag = 'internal scratch']
  #allocation2 [shape = 'f32[16,32]{1,0:T(8,128)}', space=vmem, size = 0x2000, scoped, tag = 'scratch operand']
  #allocation3 [shape = 'f32[16,32]{1,0:T(8,128)}', space=vmem, size = 0x2000, scoped, tag = 'scratch operand']
  %s0 = inlined_call_operand.vmem [shape: f32[16,32], index: 0, kind: input, shape index: {}]
  %s1 = inlined_call_operand.vmem [shape: f32[2,2,32], index: 1, kind: input, shape index: {}]
  %s2 = inlined_call_operand.vmem [shape: f32[32,32], index: 2, kind: input, shape index: {}]
  %s3 = inlined_call_operand.vmem [shape: f32[32,32], index: 3, kind: input, shape index: {}]
  %s4 = inlined_call_operand.vmem [shape: f32[1,32], index: 4, kind: input, shape index: {}]
  %s5 = inlined_call_operand.vmem [shape: f32[32,32], index: 5, kind: input, shape index: {}]
  %s6 = inlined_call_operand.vmem [shape: f32[32,32], index: 6, kind: input, shape index: {}]
  %s7 = inlined_call_operand.vmem [shape: f32[1,32], index: 7, kind: input, shape index: {}]
  %s8 = inlined_call_operand.vmem [shape: f32[32,32], index: 8, kind: input, shape index: {}]
  %s9 = inlined_call_operand.vmem [shape: f32[1,32], index: 9, kind: input, shape index: {}]
  %s10 = inlined_call_operand.hbm [shape: f32[16,32], index: 10, kind: output, shape index: {0}]
  %s11 = inlined_call_operand.hbm [shape: f32[2,2,32], index: 11, kind: output, shape index: {1}]
  %12 = xla_tuple %s10, %s11
  %s13 = sld [smem:[#allocation0]]
  $region58: #{rnn_forward.1} parent=0
    _
  %s15 = ssub.s32 1, %s13
  %s16 = scalar_select 0, %s15, %s13
  $region1: #{rnn_forward.1} parent=0
    #allocation4 [shape = 'u8[8192]{0}', space=vmem, size = 0x2000, scoped, tag = 'output window, operand 0, single buffered']
    #allocation5 [shape = 's32[1]{0}', space=sflag, size = 0x4, scoped, tag = 'scoped memory for rnn_forward.1']
    #allocation6 [shape = 'u8[2048]{0}', space=vmem, size = 0x800, scoped, tag = 'output window, operand 1, single buffered']
    #allocation7 [shape = 's32[1]{0}', space=sflag, size = 0x4, scoped, tag = 'scoped memory for rnn_forward.1']
    %17 = vsyncpa [#allocation5], 0
    %18 = vsyncpa [#allocation7], 0
    // Predicated region
    $region2: #{rnn_forward.1} parent=1 // pred_check
      _
    $region3: #{rnn_forward.1} parent=1 // pred_check_branch
      %20 = sbr.rel (0) target = $region5
    $region4: #{rnn_forward.1} parent=1 // pred_region
      _
    $region5: #{rnn_forward.1} parent=1 // pred_fallthru
      _
    // Predicated region
    $region6: #{rnn_forward.1} parent=1 // pred_check
      _
    $region7: #{rnn_forward.1} parent=1 // pred_check_branch
      %22 = sbr.rel (0) target = $region9
    $region8: #{rnn_forward.1} parent=1 // pred_region
      _
    $region9: #{rnn_forward.1} parent=1 // pred_fallthru
      _
    // Predicated region
    $region10: #{rnn_forward.1} parent=1 // pred_check
      _
    $region11: #{rnn_forward.1} parent=1 // pred_check_branch
      %24 = sbr.rel (0) target = $region13
    $region12: #{rnn_forward.1} parent=1 // pred_region
      _
    $region13: #{rnn_forward.1} parent=1 // pred_fallthru
      _
    // Predicated region
    $region14: #{rnn_forward.1} parent=1 // pred_check
      _
    $region15: #{rnn_forward.1} parent=1 // pred_check_branch
      %26 = sbr.rel (0) target = $region17
    $region16: #{rnn_forward.1} parent=1 // pred_region
      _
    $region17: #{rnn_forward.1} parent=1 // pred_fallthru
      _
    // Predicated region
    $region18: #{rnn_forward.1} parent=1 // pred_check
      _
    $region19: #{rnn_forward.1} parent=1 // pred_check_branch
      %28 = sbr.rel (0) target = $region21
    $region20: #{rnn_forward.1} parent=1 // pred_region
      _
    $region21: #{rnn_forward.1} parent=1 // pred_fallthru
      _
    // Predicated region
    $region22: #{rnn_forward.1} parent=1 // pred_check
      _
    $region23: #{rnn_forward.1} parent=1 // pred_check_branch
      %30 = sbr.rel (0) target = $region25
    $region24: #{rnn_forward.1} parent=1 // pred_region
      _
    $region25: #{rnn_forward.1} parent=1 // pred_fallthru
      _
    // Predicated region
    $region26: #{rnn_forward.1} parent=1 // pred_check
      _
    $region27: #{rnn_forward.1} parent=1 // pred_check_branch
      %32 = sbr.rel (0) target = $region29
    $region28: #{rnn_forward.1} parent=1 // pred_region
      _
    $region29: #{rnn_forward.1} parent=1 // pred_fallthru
      _
    // Predicated region
    $region30: #{rnn_forward.1} parent=1 // pred_check
      _
    $region31: #{rnn_forward.1} parent=1 // pred_check_branch
      %34 = sbr.rel (0) target = $region33
    $region32: #{rnn_forward.1} parent=1 // pred_region
      _
    $region33: #{rnn_forward.1} parent=1 // pred_fallthru
      _
    // Predicated region
    $region34: #{rnn_forward.1} parent=1 // pred_check
      _
    $region35: #{rnn_forward.1} parent=1 // pred_check_branch
      %36 = sbr.rel (0) target = $region37
    $region36: #{rnn_forward.1} parent=1 // pred_region
      _
    $region37: #{rnn_forward.1} parent=1 // pred_fallthru
      _
    // Predicated region
    $region38: #{rnn_forward.1} parent=1 // pred_check
      _
    $region39: #{rnn_forward.1} parent=1 // pred_check_branch
      %38 = sbr.rel (0) target = $region41
    $region40: #{rnn_forward.1} parent=1 // pred_region
      _
    $region41: #{rnn_forward.1} parent=1 // pred_fallthru
      _
    %v39 = vld [vmem:[%s0] sm:$0xff]
    %v40 = vld [vmem:[%s0 + $0x8] sm:$0xff]
    %v41 = vld [vmem:[%s2] sm:$0xff]
    %v42 = vld [vmem:[%s2 + $0x8] sm:$0xff]
    %v43 = vld [vmem:[%s2 + $0x10] sm:$0xff]
    %v44 = vld [vmem:[%s2 + $0x18] sm:$0xff]
    %v45 = vld [vmem:[%s4] sm:$0x1]
    %v47 = vperm.slane %v45, 0
    %vm49 = vcmask 261120
    %v51 = vsel %vm49, %v39, 0
    %v54 = vsel %vm49, %v40, 0
    %56 = vmatpush.msra.mxu0 0.0
    %57 = vmatpush.msra.mxu0 0.0
    %58 = vmatpush.msra.mxu0 0.0
    %59 = vmatpush.msra.mxu0 0.0
    %60 = vmatpush.msra.mxu0 0.0
    %61 = vmatpush.msra.mxu0 0.0
    %62 = vmatpush.msra.mxu0 0.0
    %63 = vmatpush.msra.mxu0 0.0
    %64 = vmatpush.msra.mxu0 0.0
    %65 = vmatpush.msra.mxu0 0.0
    %66 = vmatpush.msra.mxu0 0.0
    %67 = vmatpush.msra.mxu0 0.0
    %68 = vmatpush.msra.mxu0 %v44
    %69 = vmatpush.msra.mxu0 %v43
    %70 = vmatpush.msra.mxu0 %v42
    %71 = vmatpush.msra.mxu0 %v41
    %72 = vmatmul.f32.gmra.mxu0 %v51
    %v73 = vpop.f32.mrf.mxu0
    %v74 = vadd.f32 %v47, %v73
    %75 = vmatmul.f32.gmra.mxu0 %v54
    %v76 = vpop.f32.mrf.mxu0
    %v77 = vadd.f32 %v47, %v76
    %78 = vdwg.mxu0
    %79 = vst.msk [vmem:[#allocation2] sm:$0xff] %vm49, %v74
    %80 = vst.msk [vmem:[#allocation2 + $0x8] sm:$0xff] %vm49, %v77
    %v81 = vld [vmem:[%s3] sm:$0xff]
    %v82 = vld [vmem:[%s3 + $0x8] sm:$0xff]
    %v83 = vld [vmem:[%s3 + $0x10] sm:$0xff]
    %v84 = vld [vmem:[%s3 + $0x18] sm:$0xff]
    %v85 = vld [vmem:[%s5] sm:$0xff]
    %v86 = vld [vmem:[%s5 + $0x8] sm:$0xff]
    %v87 = vld [vmem:[%s5 + $0x10] sm:$0xff]
    %v88 = vld [vmem:[%s5 + $0x18] sm:$0xff]
    %v89 = vld [vmem:[%s6] sm:$0xff]
    %v90 = vld [vmem:[%s6 + $0x8] sm:$0xff]
    %v91 = vld [vmem:[%s6 + $0x10] sm:$0xff]
    %v92 = vld [vmem:[%s6 + $0x18] sm:$0xff]
    %v93 = vld [vmem:[%s7] sm:$0x1]
    %v94 = vld [vmem:[%s1] sm:$0x3]
    %s95 = scalar_lea.vmem %s1, 2
    %v96 = vld [vmem:[%s95] sm:$0x3]
    %v97 = vld [vmem:[#allocation2] sm:$0x3]
    %v99 = vsel %vm49, %v94, 0
    %101 = vmatpush.msra.mxu0 0.0
    %102 = vmatpush.msra.mxu0 0.0
    %103 = vmatpush.msra.mxu0 0.0
    %104 = vmatpush.msra.mxu0 0.0
    %105 = vmatpush.msra.mxu0 0.0
    %106 = vmatpush.msra.mxu0 0.0
    %107 = vmatpush.msra.mxu0 0.0
    %108 = vmatpush.msra.mxu0 0.0
    %109 = vmatpush.msra.mxu0 0.0
    %110 = vmatpush.msra.mxu0 0.0
    %111 = vmatpush.msra.mxu0 0.0
    %112 = vmatpush.msra.mxu0 0.0
    %113 = vmatpush.msra.mxu0 %v84
    %114 = vmatpush.msra.mxu0 %v83
    %115 = vmatpush.msra.mxu0 %v82
    %116 = vmatpush.msra.mxu0 %v81
    %117 = vmatmul.f32.gmra.mxu0 %v99
    %v118 = vpop.f32.mrf.mxu0
    %v119 = vadd.f32 0.0, %v118
    %120 = vdwg.mxu0
    %v121 = vadd.f32 %v97, %v119
    %v122 = vtanh.pop %v121
    %v124 = vsel %vm49, %v96, 0
    %126 = vmatpush.msra.mxu0 0.0
    %127 = vmatpush.msra.mxu0 0.0
    %128 = vmatpush.msra.mxu0 0.0
    %129 = vmatpush.msra.mxu0 0.0
    %130 = vmatpush.msra.mxu0 0.0
    %131 = vmatpush.msra.mxu0 0.0
    %132 = vmatpush.msra.mxu0 0.0
    %133 = vmatpush.msra.mxu0 0.0
    %134 = vmatpush.msra.mxu0 0.0
    %135 = vmatpush.msra.mxu0 0.0
    %136 = vmatpush.msra.mxu0 0.0
    %137 = vmatpush.msra.mxu0 0.0
    %138 = vmatpush.msra.mxu0 %v92
    %139 = vmatpush.msra.mxu0 %v91
    %140 = vmatpush.msra.mxu0 %v90
    %141 = vmatpush.msra.mxu0 %v89
    %142 = vmatmul.f32.gmra.mxu0 %v124
    %v143 = vpop.f32.mrf.mxu0
    %v144 = vadd.f32 0.0, %v143
    %145 = vdwg.mxu0
    %v147 = vsel %vm49, %v122, 0
    %149 = vmatpush.msra.mxu0 0.0
    %150 = vmatpush.msra.mxu0 0.0
    %151 = vmatpush.msra.mxu0 0.0
    %152 = vmatpush.msra.mxu0 0.0
    %153 = vmatpush.msra.mxu0 0.0
    %154 = vmatpush.msra.mxu0 0.0
    %155 = vmatpush.msra.mxu0 0.0
    %156 = vmatpush.msra.mxu0 0.0
    %157 = vmatpush.msra.mxu0 0.0
    %158 = vmatpush.msra.mxu0 0.0
    %159 = vmatpush.msra.mxu0 0.0
    %160 = vmatpush.msra.mxu0 0.0
    %161 = vmatpush.msra.mxu0 %v88
    %162 = vmatpush.msra.mxu0 %v87
    %163 = vmatpush.msra.mxu0 %v86
    %164 = vmatpush.msra.mxu0 %v85
    %165 = vmatmul.f32.gmra.mxu0 %v147
    %v166 = vpop.f32.mrf.mxu0
    %v167 = vadd.f32 %v144, %v166
    %168 = vdwg.mxu0
    %v170 = vperm.slane %v93, 0
    %v172 = vadd.f32 %v167, %v170
    %v173 = vtanh.pop %v172
    %vm174 = vcmask 254976
    %175 = vst.msk [vmem:[#allocation3] sm:$0x3] %vm174, %v173
    %v176 = vld [vmem:[#allocation2 + $0x2] sm:$0x3]
    %177 = vmatpush.msra.mxu0 0.0
    %178 = vmatpush.msra.mxu0 0.0
    %179 = vmatpush.msra.mxu0 0.0
    %180 = vmatpush.msra.mxu0 0.0
    %181 = vmatpush.msra.mxu0 0.0
    %182 = vmatpush.msra.mxu0 0.0
    %183 = vmatpush.msra.mxu0 0.0
    %184 = vmatpush.msra.mxu0 0.0
    %185 = vmatpush.msra.mxu0 0.0
    %186 = vmatpush.msra.mxu0 0.0
    %187 = vmatpush.msra.mxu0 0.0
    %188 = vmatpush.msra.mxu0 0.0
    %189 = vmatpush.msra.mxu0 %v84
    %190 = vmatpush.msra.mxu0 %v83
    %191 = vmatpush.msra.mxu0 %v82
    %192 = vmatpush.msra.mxu0 %v81
    %193 = vmatmul.f32.gmra.mxu0 %v147
    %v194 = vpop.f32.mrf.mxu0
    %v195 = vadd.f32 0.0, %v194
    %196 = vdwg.mxu0
    %v197 = vadd.f32 %v176, %v195
    %v198 = vtanh.pop %v197
    %v200 = vsel %vm49, %v173, 0
    %202 = vmatpush.msra.mxu0 0.0
    %203 = vmatpush.msra.mxu0 0.0
    %204 = vmatpush.msra.mxu0 0.0
    %205 = vmatpush.msra.mxu0 0.0
    %206 = vmatpush.msra.mxu0 0.0
    %207 = vmatpush.msra.mxu0 0.0
    %208 = vmatpush.msra.mxu0 0.0
    %209 = vmatpush.msra.mxu0 0.0
    %210 = vmatpush.msra.mxu0 0.0
    %211 = vmatpush.msra.mxu0 0.0
    %212 = vmatpush.msra.mxu0 0.0
    %213 = vmatpush.msra.mxu0 0.0
    %214 = vmatpush.msra.mxu0 %v92
    %215 = vmatpush.msra.mxu0 %v91
    %216 = vmatpush.msra.mxu0 %v90
    %217 = vmatpush.msra.mxu0 %v89
    %218 = vmatmul.f32.gmra.mxu0 %v200
    %v219 = vpop.f32.mrf.mxu0
    %v220 = vadd.f32 0.0, %v219
    %221 = vdwg.mxu0
    %v223 = vsel %vm49, %v198, 0
    %225 = vmatpush.msra.mxu0 0.0
    %226 = vmatpush.msra.mxu0 0.0
    %227 = vmatpush.msra.mxu0 0.0
    %228 = vmatpush.msra.mxu0 0.0
    %229 = vmatpush.msra.mxu0 0.0
    %230 = vmatpush.msra.mxu0 0.0
    %231 = vmatpush.msra.mxu0 0.0
    %232 = vmatpush.msra.mxu0 0.0
    %233 = vmatpush.msra.mxu0 0.0
    %234 = vmatpush.msra.mxu0 0.0
    %235 = vmatpush.msra.mxu0 0.0
    %236 = vmatpush.msra.mxu0 0.0
    %237 = vmatpush.msra.mxu0 %v88
    %238 = vmatpush.msra.mxu0 %v87
    %239 = vmatpush.msra.mxu0 %v86
    %240 = vmatpush.msra.mxu0 %v85
    %241 = vmatmul.f32.gmra.mxu0 %v223
    %v242 = vpop.f32.mrf.mxu0
    %v243 = vadd.f32 %v220, %v242
    %244 = vdwg.mxu0
    %v245 = vadd.f32 %v243, %v170
    %v246 = vtanh.pop %v245
    %247 = vst.msk [vmem:[#allocation3 + $0x2] sm:$0x3] %vm174, %v246
    %v248 = vld [vmem:[#allocation2 + $0x4] sm:$0x3]
    %249 = vmatpush.msra.mxu0 0.0
    %250 = vmatpush.msra.mxu0 0.0
    %251 = vmatpush.msra.mxu0 0.0
    %252 = vmatpush.msra.mxu0 0.0
    %253 = vmatpush.msra.mxu0 0.0
    %254 = vmatpush.msra.mxu0 0.0
    %255 = vmatpush.msra.mxu0 0.0
    %256 = vmatpush.msra.mxu0 0.0
    %257 = vmatpush.msra.mxu0 0.0
    %258 = vmatpush.msra.mxu0 0.0
    %259 = vmatpush.msra.mxu0 0.0
    %260 = vmatpush.msra.mxu0 0.0
    %261 = vmatpush.msra.mxu0 %v84
    %262 = vmatpush.msra.mxu0 %v83
    %263 = vmatpush.msra.mxu0 %v82
    %264 = vmatpush.msra.mxu0 %v81
    %265 = vmatmul.f32.gmra.mxu0 %v223
    %v266 = vpop.f32.mrf.mxu0
    %v267 = vadd.f32 0.0, %v266
    %268 = vdwg.mxu0
    %v269 = vadd.f32 %v248, %v267
    %v270 = vtanh.pop %v269
    %v272 = vsel %vm49, %v246, 0
    %274 = vmatpush.msra.mxu0 0.0
    %275 = vmatpush.msra.mxu0 0.0
    %276 = vmatpush.msra.mxu0 0.0
    %277 = vmatpush.msra.mxu0 0.0
    %278 = vmatpush.msra.mxu0 0.0
    %279 = vmatpush.msra.mxu0 0.0
    %280 = vmatpush.msra.mxu0 0.0
    %281 = vmatpush.msra.mxu0 0.0
    %282 = vmatpush.msra.mxu0 0.0
    %283 = vmatpush.msra.mxu0 0.0
    %284 = vmatpush.msra.mxu0 0.0
    %285 = vmatpush.msra.mxu0 0.0
    %286 = vmatpush.msra.mxu0 %v92
    %287 = vmatpush.msra.mxu0 %v91
    %288 = vmatpush.msra.mxu0 %v90
    %289 = vmatpush.msra.mxu0 %v89
    %290 = vmatmul.f32.gmra.mxu0 %v272
    %v291 = vpop.f32.mrf.mxu0
    %v292 = vadd.f32 0.0, %v291
    %293 = vdwg.mxu0
    %v295 = vsel %vm49, %v270, 0
    %297 = vmatpush.msra.mxu0 0.0
    %298 = vmatpush.msra.mxu0 0.0
    %299 = vmatpush.msra.mxu0 0.0
    %300 = vmatpush.msra.mxu0 0.0
    %301 = vmatpush.msra.mxu0 0.0
    %302 = vmatpush.msra.mxu0 0.0
    %303 = vmatpush.msra.mxu0 0.0
    %304 = vmatpush.msra.mxu0 0.0
    %305 = vmatpush.msra.mxu0 0.0
    %306 = vmatpush.msra.mxu0 0.0
    %307 = vmatpush.msra.mxu0 0.0
    %308 = vmatpush.msra.mxu0 0.0
    %309 = vmatpush.msra.mxu0 %v88
    %310 = vmatpush.msra.mxu0 %v87
    %311 = vmatpush.msra.mxu0 %v86
    %312 = vmatpush.msra.mxu0 %v85
    %313 = vmatmul.f32.gmra.mxu0 %v295
    %v314 = vpop.f32.mrf.mxu0
    %v315 = vadd.f32 %v292, %v314
    %316 = vdwg.mxu0
    %v317 = vadd.f32 %v315, %v170
    %v318 = vtanh.pop %v317
    %319 = vst.msk [vmem:[#allocation3 + $0x4] sm:$0x3] %vm174, %v318
    %v320 = vld [vmem:[#allocation2 + $0x6] sm:$0x3]
    %321 = vmatpush.msra.mxu0 0.0
    %322 = vmatpush.msra.mxu0 0.0
    %323 = vmatpush.msra.mxu0 0.0
    %324 = vmatpush.msra.mxu0 0.0
    %325 = vmatpush.msra.mxu0 0.0
    %326 = vmatpush.msra.mxu0 0.0
    %327 = vmatpush.msra.mxu0 0.0
    %328 = vmatpush.msra.mxu0 0.0
    %329 = vmatpush.msra.mxu0 0.0
    %330 = vmatpush.msra.mxu0 0.0
    %331 = vmatpush.msra.mxu0 0.0
    %332 = vmatpush.msra.mxu0 0.0
    %333 = vmatpush.msra.mxu0 %v84
    %334 = vmatpush.msra.mxu0 %v83
    %335 = vmatpush.msra.mxu0 %v82
    %336 = vmatpush.msra.mxu0 %v81
    %337 = vmatmul.f32.gmra.mxu0 %v295
    %v338 = vpop.f32.mrf.mxu0
    %v339 = vadd.f32 0.0, %v338
    %340 = vdwg.mxu0
    %v341 = vadd.f32 %v320, %v339
    %v342 = vtanh.pop %v341
    %v344 = vsel %vm49, %v318, 0
    %346 = vmatpush.msra.mxu0 0.0
    %347 = vmatpush.msra.mxu0 0.0
    %348 = vmatpush.msra.mxu0 0.0
    %349 = vmatpush.msra.mxu0 0.0
    %350 = vmatpush.msra.mxu0 0.0
    %351 = vmatpush.msra.mxu0 0.0
    %352 = vmatpush.msra.mxu0 0.0
    %353 = vmatpush.msra.mxu0 0.0
    %354 = vmatpush.msra.mxu0 0.0
    %355 = vmatpush.msra.mxu0 0.0
    %356 = vmatpush.msra.mxu0 0.0
    %357 = vmatpush.msra.mxu0 0.0
    %358 = vmatpush.msra.mxu0 %v92
    %359 = vmatpush.msra.mxu0 %v91
    %360 = vmatpush.msra.mxu0 %v90
    %361 = vmatpush.msra.mxu0 %v89
    %362 = vmatmul.f32.gmra.mxu0 %v344
    %v363 = vpop.f32.mrf.mxu0
    %v364 = vadd.f32 0.0, %v363
    %365 = vdwg.mxu0
    %v367 = vsel %vm49, %v342, 0
    %369 = vmatpush.msra.mxu0 0.0
    %370 = vmatpush.msra.mxu0 0.0
    %371 = vmatpush.msra.mxu0 0.0
    %372 = vmatpush.msra.mxu0 0.0
    %373 = vmatpush.msra.mxu0 0.0
    %374 = vmatpush.msra.mxu0 0.0
    %375 = vmatpush.msra.mxu0 0.0
    %376 = vmatpush.msra.mxu0 0.0
    %377 = vmatpush.msra.mxu0 0.0
    %378 = vmatpush.msra.mxu0 0.0
    %379 = vmatpush.msra.mxu0 0.0
    %380 = vmatpush.msra.mxu0 0.0
    %381 = vmatpush.msra.mxu0 %v88
    %382 = vmatpush.msra.mxu0 %v87
    %383 = vmatpush.msra.mxu0 %v86
    %384 = vmatpush.msra.mxu0 %v85
    %385 = vmatmul.f32.gmra.mxu0 %v367
    %v386 = vpop.f32.mrf.mxu0
    %v387 = vadd.f32 %v364, %v386
    %388 = vdwg.mxu0
    %v389 = vadd.f32 %v387, %v170
    %v390 = vtanh.pop %v389
    %391 = vst.msk [vmem:[#allocation3 + $0x6] sm:$0x3] %vm174, %v390
    %v392 = vld [vmem:[#allocation2 + $0x8] sm:$0x3]
    %393 = vmatpush.msra.mxu0 0.0
    %394 = vmatpush.msra.mxu0 0.0
    %395 = vmatpush.msra.mxu0 0.0
    %396 = vmatpush.msra.mxu0 0.0
    %397 = vmatpush.msra.mxu0 0.0
    %398 = vmatpush.msra.mxu0 0.0
    %399 = vmatpush.msra.mxu0 0.0
    %400 = vmatpush.msra.mxu0 0.0
    %401 = vmatpush.msra.mxu0 0.0
    %402 = vmatpush.msra.mxu0 0.0
    %403 = vmatpush.msra.mxu0 0.0
    %404 = vmatpush.msra.mxu0 0.0
    %405 = vmatpush.msra.mxu0 %v84
    %406 = vmatpush.msra.mxu0 %v83
    %407 = vmatpush.msra.mxu0 %v82
    %408 = vmatpush.msra.mxu0 %v81
    %409 = vmatmul.f32.gmra.mxu0 %v367
    %v410 = vpop.f32.mrf.mxu0
    %v411 = vadd.f32 0.0, %v410
    %412 = vdwg.mxu0
    %v413 = vadd.f32 %v392, %v411
    %v414 = vtanh.pop %v413
    %v416 = vsel %vm49, %v390, 0
    %418 = vmatpush.msra.mxu0 0.0
    %419 = vmatpush.msra.mxu0 0.0
    %420 = vmatpush.msra.mxu0 0.0
    %421 = vmatpush.msra.mxu0 0.0
    %422 = vmatpush.msra.mxu0 0.0
    %423 = vmatpush.msra.mxu0 0.0
    %424 = vmatpush.msra.mxu0 0.0
    %425 = vmatpush.msra.mxu0 0.0
    %426 = vmatpush.msra.mxu0 0.0
    %427 = vmatpush.msra.mxu0 0.0
    %428 = vmatpush.msra.mxu0 0.0
    %429 = vmatpush.msra.mxu0 0.0
    %430 = vmatpush.msra.mxu0 %v92
    %431 = vmatpush.msra.mxu0 %v91
    %432 = vmatpush.msra.mxu0 %v90
    %433 = vmatpush.msra.mxu0 %v89
    %434 = vmatmul.f32.gmra.mxu0 %v416
    %v435 = vpop.f32.mrf.mxu0
    %v436 = vadd.f32 0.0, %v435
    %437 = vdwg.mxu0
    %v439 = vsel %vm49, %v414, 0
    %441 = vmatpush.msra.mxu0 0.0
    %442 = vmatpush.msra.mxu0 0.0
    %443 = vmatpush.msra.mxu0 0.0
    %444 = vmatpush.msra.mxu0 0.0
    %445 = vmatpush.msra.mxu0 0.0
    %446 = vmatpush.msra.mxu0 0.0
    %447 = vmatpush.msra.mxu0 0.0
    %448 = vmatpush.msra.mxu0 0.0
    %449 = vmatpush.msra.mxu0 0.0
    %450 = vmatpush.msra.mxu0 0.0
    %451 = vmatpush.msra.mxu0 0.0
    %452 = vmatpush.msra.mxu0 0.0
    %453 = vmatpush.msra.mxu0 %v88
    %454 = vmatpush.msra.mxu0 %v87
    %455 = vmatpush.msra.mxu0 %v86
    %456 = vmatpush.msra.mxu0 %v85
    %457 = vmatmul.f32.gmra.mxu0 %v439
    %v458 = vpop.f32.mrf.mxu0
    %v459 = vadd.f32 %v436, %v458
    %460 = vdwg.mxu0
    %v461 = vadd.f32 %v459, %v170
    %v462 = vtanh.pop %v461
    %463 = vst.msk [vmem:[#allocation3 + $0x8] sm:$0x3] %vm174, %v462
    %v464 = vld [vmem:[#allocation2 + $0xa] sm:$0x3]
    %465 = vmatpush.msra.mxu0 0.0
    %466 = vmatpush.msra.mxu0 0.0
    %467 = vmatpush.msra.mxu0 0.0
    %468 = vmatpush.msra.mxu0 0.0
    %469 = vmatpush.msra.mxu0 0.0
    %470 = vmatpush.msra.mxu0 0.0
    %471 = vmatpush.msra.mxu0 0.0
    %472 = vmatpush.msra.mxu0 0.0
    %473 = vmatpush.msra.mxu0 0.0
    %474 = vmatpush.msra.mxu0 0.0
    %475 = vmatpush.msra.mxu0 0.0
    %476 = vmatpush.msra.mxu0 0.0
    %477 = vmatpush.msra.mxu0 %v84
    %478 = vmatpush.msra.mxu0 %v83
    %479 = vmatpush.msra.mxu0 %v82
    %480 = vmatpush.msra.mxu0 %v81
    %481 = vmatmul.f32.gmra.mxu0 %v439
    %v482 = vpop.f32.mrf.mxu0
    %v483 = vadd.f32 0.0, %v482
    %484 = vdwg.mxu0
    %v485 = vadd.f32 %v464, %v483
    %v486 = vtanh.pop %v485
    %v488 = vsel %vm49, %v462, 0
    %490 = vmatpush.msra.mxu0 0.0
    %491 = vmatpush.msra.mxu0 0.0
    %492 = vmatpush.msra.mxu0 0.0
    %493 = vmatpush.msra.mxu0 0.0
    %494 = vmatpush.msra.mxu0 0.0
    %495 = vmatpush.msra.mxu0 0.0
    %496 = vmatpush.msra.mxu0 0.0
    %497 = vmatpush.msra.mxu0 0.0
    %498 = vmatpush.msra.mxu0 0.0
    %499 = vmatpush.msra.mxu0 0.0
    %500 = vmatpush.msra.mxu0 0.0
    %501 = vmatpush.msra.mxu0 0.0
    %502 = vmatpush.msra.mxu0 %v92
    %503 = vmatpush.msra.mxu0 %v91
    %504 = vmatpush.msra.mxu0 %v90
    %505 = vmatpush.msra.mxu0 %v89
    %506 = vmatmul.f32.gmra.mxu0 %v488
    %v507 = vpop.f32.mrf.mxu0
    %v508 = vadd.f32 0.0, %v507
    %509 = vdwg.mxu0
    %v511 = vsel %vm49, %v486, 0
    %513 = vmatpush.msra.mxu0 0.0
    %514 = vmatpush.msra.mxu0 0.0
    %515 = vmatpush.msra.mxu0 0.0
    %516 = vmatpush.msra.mxu0 0.0
    %517 = vmatpush.msra.mxu0 0.0
    %518 = vmatpush.msra.mxu0 0.0
    %519 = vmatpush.msra.mxu0 0.0
    %520 = vmatpush.msra.mxu0 0.0
    %521 = vmatpush.msra.mxu0 0.0
    %522 = vmatpush.msra.mxu0 0.0
    %523 = vmatpush.msra.mxu0 0.0
    %524 = vmatpush.msra.mxu0 0.0
    %525 = vmatpush.msra.mxu0 %v88
    %526 = vmatpush.msra.mxu0 %v87
    %527 = vmatpush.msra.mxu0 %v86
    %528 = vmatpush.msra.mxu0 %v85
    %529 = vmatmul.f32.gmra.mxu0 %v511
    %v530 = vpop.f32.mrf.mxu0
    %v531 = vadd.f32 %v508, %v530
    %532 = vdwg.mxu0
    %v533 = vadd.f32 %v531, %v170
    %v534 = vtanh.pop %v533
    %535 = vst.msk [vmem:[#allocation3 + $0xa] sm:$0x3] %vm174, %v534
    %v536 = vld [vmem:[#allocation2 + $0xc] sm:$0x3]
    %537 = vmatpush.msra.mxu0 0.0
    %538 = vmatpush.msra.mxu0 0.0
    %539 = vmatpush.msra.mxu0 0.0
    %540 = vmatpush.msra.mxu0 0.0
    %541 = vmatpush.msra.mxu0 0.0
    %542 = vmatpush.msra.mxu0 0.0
    %543 = vmatpush.msra.mxu0 0.0
    %544 = vmatpush.msra.mxu0 0.0
    %545 = vmatpush.msra.mxu0 0.0
    %546 = vmatpush.msra.mxu0 0.0
    %547 = vmatpush.msra.mxu0 0.0
    %548 = vmatpush.msra.mxu0 0.0
    %549 = vmatpush.msra.mxu0 %v84
    %550 = vmatpush.msra.mxu0 %v83
    %551 = vmatpush.msra.mxu0 %v82
    %552 = vmatpush.msra.mxu0 %v81
    %553 = vmatmul.f32.gmra.mxu0 %v511
    %v554 = vpop.f32.mrf.mxu0
    %v555 = vadd.f32 0.0, %v554
    %556 = vdwg.mxu0
    %v557 = vadd.f32 %v536, %v555
    %v558 = vtanh.pop %v557
    %v560 = vsel %vm49, %v534, 0
    %562 = vmatpush.msra.mxu0 0.0
    %563 = vmatpush.msra.mxu0 0.0
    %564 = vmatpush.msra.mxu0 0.0
    %565 = vmatpush.msra.mxu0 0.0
    %566 = vmatpush.msra.mxu0 0.0
    %567 = vmatpush.msra.mxu0 0.0
    %568 = vmatpush.msra.mxu0 0.0
    %569 = vmatpush.msra.mxu0 0.0
    %570 = vmatpush.msra.mxu0 0.0
    %571 = vmatpush.msra.mxu0 0.0
    %572 = vmatpush.msra.mxu0 0.0
    %573 = vmatpush.msra.mxu0 0.0
    %574 = vmatpush.msra.mxu0 %v92
    %575 = vmatpush.msra.mxu0 %v91
    %576 = vmatpush.msra.mxu0 %v90
    %577 = vmatpush.msra.mxu0 %v89
    %578 = vmatmul.f32.gmra.mxu0 %v560
    %v579 = vpop.f32.mrf.mxu0
    %v580 = vadd.f32 0.0, %v579
    %581 = vdwg.mxu0
    %v583 = vsel %vm49, %v558, 0
    %585 = vmatpush.msra.mxu0 0.0
    %586 = vmatpush.msra.mxu0 0.0
    %587 = vmatpush.msra.mxu0 0.0
    %588 = vmatpush.msra.mxu0 0.0
    %589 = vmatpush.msra.mxu0 0.0
    %590 = vmatpush.msra.mxu0 0.0
    %591 = vmatpush.msra.mxu0 0.0
    %592 = vmatpush.msra.mxu0 0.0
    %593 = vmatpush.msra.mxu0 0.0
    %594 = vmatpush.msra.mxu0 0.0
    %595 = vmatpush.msra.mxu0 0.0
    %596 = vmatpush.msra.mxu0 0.0
    %597 = vmatpush.msra.mxu0 %v88
    %598 = vmatpush.msra.mxu0 %v87
    %599 = vmatpush.msra.mxu0 %v86
    %600 = vmatpush.msra.mxu0 %v85
    %601 = vmatmul.f32.gmra.mxu0 %v583
    %v602 = vpop.f32.mrf.mxu0
    %v603 = vadd.f32 %v580, %v602
    %604 = vdwg.mxu0
    %v605 = vadd.f32 %v603, %v170
    %v606 = vtanh.pop %v605
    %607 = vst.msk [vmem:[#allocation3 + $0xc] sm:$0x3] %vm174, %v606
    %v608 = vld [vmem:[#allocation2 + $0xe] sm:$0x3]
    %609 = vmatpush.msra.mxu0 0.0
    %610 = vmatpush.msra.mxu0 0.0
    %611 = vmatpush.msra.mxu0 0.0
    %612 = vmatpush.msra.mxu0 0.0
    %613 = vmatpush.msra.mxu0 0.0
    %614 = vmatpush.msra.mxu0 0.0
    %615 = vmatpush.msra.mxu0 0.0
    %616 = vmatpush.msra.mxu0 0.0
    %617 = vmatpush.msra.mxu0 0.0
    %618 = vmatpush.msra.mxu0 0.0
    %619 = vmatpush.msra.mxu0 0.0
    %620 = vmatpush.msra.mxu0 0.0
    %621 = vmatpush.msra.mxu0 %v84
    %622 = vmatpush.msra.mxu0 %v83
    %623 = vmatpush.msra.mxu0 %v82
    %624 = vmatpush.msra.mxu0 %v81
    %625 = vmatmul.f32.gmra.mxu0 %v583
    %v626 = vpop.f32.mrf.mxu0
    %v627 = vadd.f32 0.0, %v626
    %628 = vdwg.mxu0
    %v629 = vadd.f32 %v608, %v627
    %v630 = vtanh.pop %v629
    %v632 = vsel %vm49, %v606, 0
    %634 = vmatpush.msra.mxu0 0.0
    %635 = vmatpush.msra.mxu0 0.0
    %636 = vmatpush.msra.mxu0 0.0
    %637 = vmatpush.msra.mxu0 0.0
    %638 = vmatpush.msra.mxu0 0.0
    %639 = vmatpush.msra.mxu0 0.0
    %640 = vmatpush.msra.mxu0 0.0
    %641 = vmatpush.msra.mxu0 0.0
    %642 = vmatpush.msra.mxu0 0.0
    %643 = vmatpush.msra.mxu0 0.0
    %644 = vmatpush.msra.mxu0 0.0
    %645 = vmatpush.msra.mxu0 0.0
    %646 = vmatpush.msra.mxu0 %v92
    %647 = vmatpush.msra.mxu0 %v91
    %648 = vmatpush.msra.mxu0 %v90
    %649 = vmatpush.msra.mxu0 %v89
    %650 = vmatmul.f32.gmra.mxu0 %v632
    %v651 = vpop.f32.mrf.mxu0
    %v652 = vadd.f32 0.0, %v651
    %653 = vdwg.mxu0
    %v655 = vsel %vm49, %v630, 0
    %657 = vmatpush.msra.mxu0 0.0
    %658 = vmatpush.msra.mxu0 0.0
    %659 = vmatpush.msra.mxu0 0.0
    %660 = vmatpush.msra.mxu0 0.0
    %661 = vmatpush.msra.mxu0 0.0
    %662 = vmatpush.msra.mxu0 0.0
    %663 = vmatpush.msra.mxu0 0.0
    %664 = vmatpush.msra.mxu0 0.0
    %665 = vmatpush.msra.mxu0 0.0
    %666 = vmatpush.msra.mxu0 0.0
    %667 = vmatpush.msra.mxu0 0.0
    %668 = vmatpush.msra.mxu0 0.0
    %669 = vmatpush.msra.mxu0 %v88
    %670 = vmatpush.msra.mxu0 %v87
    %671 = vmatpush.msra.mxu0 %v86
    %672 = vmatpush.msra.mxu0 %v85
    %673 = vmatmul.f32.gmra.mxu0 %v655
    %v674 = vpop.f32.mrf.mxu0
    %v675 = vadd.f32 %v652, %v674
    %676 = vdwg.mxu0
    %v677 = vadd.f32 %v675, %v170
    %v678 = vtanh.pop %v677
    %679 = vst.msk [vmem:[#allocation3 + $0xe] sm:$0x3] %vm174, %v678
    %v680 = vld [vmem:[#allocation3] sm:$0xff]
    %v681 = vld [vmem:[#allocation3 + $0x8] sm:$0xff]
    %v682 = vld [vmem:[%s8] sm:$0xff]
    %v683 = vld [vmem:[%s8 + $0x8] sm:$0xff]
    %v684 = vld [vmem:[%s8 + $0x10] sm:$0xff]
    %v685 = vld [vmem:[%s8 + $0x18] sm:$0xff]
    %v686 = vld [vmem:[%s9] sm:$0x1]
    %v688 = vperm.slane %v686, 0
    %v691 = vsel %vm49, %v680, 0
    %v694 = vsel %vm49, %v681, 0
    %696 = vmatpush.msra.mxu0 0.0
    %697 = vmatpush.msra.mxu0 0.0
    %698 = vmatpush.msra.mxu0 0.0
    %699 = vmatpush.msra.mxu0 0.0
    %700 = vmatpush.msra.mxu0 0.0
    %701 = vmatpush.msra.mxu0 0.0
    %702 = vmatpush.msra.mxu0 0.0
    %703 = vmatpush.msra.mxu0 0.0
    %704 = vmatpush.msra.mxu0 0.0
    %705 = vmatpush.msra.mxu0 0.0
    %706 = vmatpush.msra.mxu0 0.0
    %707 = vmatpush.msra.mxu0 0.0
    %708 = vmatpush.msra.mxu0 %v685
    %709 = vmatpush.msra.mxu0 %v684
    %710 = vmatpush.msra.mxu0 %v683
    %711 = vmatpush.msra.mxu0 %v682
    %712 = vmatmul.f32.gmra.mxu0 %v691
    %v713 = vpop.f32.mrf.mxu0
    %v714 = vadd.f32 %v688, %v713
    %715 = vmatmul.f32.gmra.mxu0 %v694
    %v716 = vpop.f32.mrf.mxu0
    %v717 = vadd.f32 %v688, %v716
    %718 = vdwg.mxu0
    %719 = vst.msk [vmem:[#allocation4] sm:$0xff] %vm49, %v714
    %720 = vst.msk [vmem:[#allocation4 + $0x8] sm:$0xff] %vm49, %v717
    %721 = vst.msk [vmem:[#allocation6] sm:$0x3] %vm174, %v630
    %s722 = scalar_lea.vmem [#allocation6], 2
    %723 = vst.msk [vmem:[%s722] sm:$0x3] %vm174, %v678
    // Predicated region
    $region42: #{rnn_forward.1} parent=1 // pred_check
      _
    $region43: #{rnn_forward.1} parent=1 // pred_check_branch
      %725 = sbr.rel (0) target = $region45
    $region44: #{rnn_forward.1} parent=1 // pred_region
      %727 = vsyncadd [#allocation5], 0
      %s728 = sshll.u32 [#allocation4], 4
      %s729 = int_to_ptr.vmem [resolvable:$true] %s728
      %s730 = sshll.u32 %s10, 4
      %s731 = int_to_ptr.hbm [resolvable:$true] %s730
      %736 = dma.vmem_to_hbm [thread:$0]  %s729, 256, %s731, [#allocation5], 128, 128, 8
    $region45: #{rnn_forward.1} parent=1 // pred_fallthru
      _
    // Predicated region
    $region46: #{rnn_forward.1} parent=1 // pred_check
      _
    $region47: #{rnn_forward.1} parent=1 // pred_check_branch
      %738 = sbr.rel (0) target = $region49
    $region48: #{rnn_forward.1} parent=1 // pred_region
      %740 = vsyncadd [#allocation7], 0
      %s741 = sshll.u32 [#allocation6], 4
      %s742 = int_to_ptr.vmem [resolvable:$true] %s741
      %s743 = sshll.u32 %s11, 4
      %s744 = int_to_ptr.hbm [resolvable:$true] %s743
      %749 = dma.vmem_to_hbm [thread:$0]  %s742, 64, %s744, [#allocation7], 32, 32, 2
    $region49: #{rnn_forward.1} parent=1 // pred_fallthru
      _
    // Predicated region
    $region50: #{rnn_forward.1} parent=1 // pred_check
      _
    $region51: #{rnn_forward.1} parent=1 // pred_check_branch
      %751 = sbr.rel (0) target = $region53
    $region52: #{rnn_forward.1} parent=1 // pred_region
      %753 = dma.done [#allocation5], 256
    $region53: #{rnn_forward.1} parent=1 // pred_fallthru
      _
    // Predicated region
    $region54: #{rnn_forward.1} parent=1 // pred_check
      _
    $region55: #{rnn_forward.1} parent=1 // pred_check_branch
      %755 = sbr.rel (0) target = $region57
    $region56: #{rnn_forward.1} parent=1 // pred_region
      %757 = dma.done [#allocation7], 64
    $region57: #{rnn_forward.1} parent=1 // pred_fallthru
      _
    %758 = vsyncpa [#allocation5], 1
    %759 = vsyncpa [#allocation7], 1

</llo_original>
